<compile_context>
chip_gen: v7x
topology: tpu7x:2x2x1
jax: 0.10.0
libtpu: 0.0.40
codegen_flags: <defaults>
</compile_context>

<pallas_src>
import functools

import jax
import jax.numpy as jnp
from jax.experimental import pallas as pl
from jax.experimental.pallas import tpu as pltpu


def _lstm_kernel(x_ref, w_cat_ref, b_ref, w_out_ref, b_out_ref,
                 out_ref, h_all, *, seq_len, batch, hidden_size):
    """Whole-sequence LSTM + output projection in one kernel invocation.

    Refs:
      x_ref     : (T*B, I)      inputs, row t*B+b is x[t, b]
      w_cat_ref : (I+H, 4H)     stacked [W_ih^T ; W_hh^T]
      b_ref     : (1, 4H)       combined bias (b_ih + b_hh)
      w_out_ref : (H, O)        output projection weights (transposed)
      b_out_ref : (1, O)        output projection bias
      out_ref   : (T*B, O)      outputs
      h_all     : (T*B, H) VMEM all hidden states (for the batched projection)
    """
    T, B, H = seq_len, batch, hidden_size

    # Lane mask selecting the g-gate columns [2H, 3H) (tanh); others use sigmoid.
    lane = jax.lax.broadcasted_iota(jnp.int32, (B, 4 * H), 1)
    g_mask = (lane >= 2 * H) & (lane < 3 * H)

    # Weights / bias stay resident in vregs across the unrolled recurrence.
    w_cat = w_cat_ref[...]
    b = b_ref[...]

    def step(t, carry):
        h, c = carry                                   # (B, H), (B, H)
        x_t = x_ref[pl.ds(t * B, B), :]                # (B, I)
        xh = jnp.concatenate([x_t, h], axis=-1)        # (B, I+H)
        # One fused MXU push per step: gates (B, 4H), PyTorch order [i, f, g, o].
        gates = jnp.dot(xh, w_cat, preferred_element_type=jnp.float32) + b
        # Full-vreg sigmoid + tanh (EUP) and one VPU select instead of 4 slices.
        act = jnp.where(g_mask, jnp.tanh(gates), jax.nn.sigmoid(gates))
        i_g = act[:, 0 * H:1 * H]
        f_g = act[:, 1 * H:2 * H]
        g_g = act[:, 2 * H:3 * H]
        o_g = act[:, 3 * H:4 * H]
        c_new = f_g * c + i_g * g_g
        h_new = o_g * jnp.tanh(c_new)
        h_all[pl.ds(t * B, B), :] = h_new              # stash for batched proj.
        return (h_new, c_new)

    # h0 = c0 = 0 (matches init_hidden()).
    h0 = jnp.zeros((B, H), jnp.float32)
    c0 = jnp.zeros((B, H), jnp.float32)
    jax.lax.fori_loop(0, T, step, (h0, c0), unroll=True)

    # Single batched output projection + one bulk store.
    out_ref[...] = (
        jnp.dot(h_all[...], w_out_ref[...], preferred_element_type=jnp.float32)
        + b_out_ref[...]
    ).astype(out_ref.dtype)


def rnn_forward(x, w_ih, w_hh, b_ih, b_hh, w_out, b_out):
    """x: (T, B, I) float32.  Returns (T, B, O) float32."""
    T, B, I = x.shape
    fourH = w_ih.shape[0]
    H = fourH // 4
    O = w_out.shape[0]

    # Parameter prep (plain JAX glue, outside the kernel).
    w_cat = jnp.concatenate(
        [jnp.asarray(w_ih, jnp.float32).T,             # (I, 4H)
         jnp.asarray(w_hh, jnp.float32).T], axis=0)    # (H, 4H)  -> (I+H, 4H)
    b = (jnp.asarray(b_ih, jnp.float32)
         + jnp.asarray(b_hh, jnp.float32)).reshape(1, 4 * H)
    w_out_t = jnp.asarray(w_out, jnp.float32).T        # (H, O)
    b_out2 = jnp.asarray(b_out, jnp.float32).reshape(1, O)
    x2 = jnp.asarray(x, jnp.float32).reshape(T * B, I)

    kernel = functools.partial(_lstm_kernel, seq_len=T, batch=B, hidden_size=H)

    out = pl.pallas_call(
        kernel,
        out_shape=jax.ShapeDtypeStruct((T * B, O), jnp.float32),
        in_specs=[pl.BlockSpec(memory_space=pltpu.MemorySpace.VMEM)] * 5,
        out_specs=pl.BlockSpec(memory_space=pltpu.MemorySpace.VMEM),
        scratch_shapes=[pltpu.VMEM((T * B, H), jnp.float32)],
        # TODO(synk): for very long sequences, chunk time with grid=(T/chunk,)
        # ("arbitrary") and keep this body as the inner per-chunk loop.
    )(x2, w_cat, b, w_out_t, b_out2)

    return out.reshape(T, B, O)


def _reference_forward(x, w_ih, w_hh, b_ih, b_hh, w_out, b_out):
    """Pure-JAX reference of the PyTorch LSTM + Linear forward."""
    T, B, I = x.shape
    H = w_hh.shape[1]

    def step(carry, x_t):
        h, c = carry
        gates = x_t @ w_ih.T + h @ w_hh.T + b_ih + b_hh
        i_g = jax.nn.sigmoid(gates[:, 0 * H:1 * H])
        f_g = jax.nn.sigmoid(gates[:, 1 * H:2 * H])
        g_g = jnp.tanh(gates[:, 2 * H:3 * H])
        o_g = jax.nn.sigmoid(gates[:, 3 * H:4 * H])
        c_new = f_g * c + i_g * g_g
        h_new = o_g * jnp.tanh(c_new)
        return (h_new, c_new), h_new

    h0 = jnp.zeros((B, H), jnp.float32)
    c0 = jnp.zeros((B, H), jnp.float32)
    _, hs = jax.lax.scan(step, (h0, c0), x)
    return hs @ w_out.T + b_out


if __name__ == "__main__":
    # Small shapes consistent with the module: seq=8, batch=1 (forced by
    # init_hidden's (1,1,H) zeros), input=16, hidden=32, output=16.
    seq_len, batch, input_size, hidden_size, output_size = 8, 1, 16, 32, 16

    key = jax.random.PRNGKey(0)
    ks = jax.random.split(key, 7)
    scale = 1.0 / jnp.sqrt(hidden_size)

    x = jax.random.normal(ks[0], (seq_len, batch, input_size), jnp.float32)
    w_ih = jax.random.uniform(ks[1], (4 * hidden_size, input_size),
                              jnp.float32, -scale, scale)
    w_hh = jax.random.uniform(ks[2], (4 * hidden_size, hidden_size),
                              jnp.float32, -scale, scale)
    b_ih = jax.random.uniform(ks[3], (4 * hidden_size,), jnp.float32,
                              -scale, scale)
    b_hh = jax.random.uniform(ks[4], (4 * hidden_size,), jnp.float32,
                              -scale, scale)
    w_out = jax.random.uniform(ks[5], (output_size, hidden_size), jnp.float32,
                               -scale, scale)
    b_out = jax.random.uniform(ks[6], (output_size,), jnp.float32,
                               -scale, scale)

    out = rnn_forward(x, w_ih, w_hh, b_ih, b_hh, w_out, b_out)
    out = jax.block_until_ready(out)

    ref = _reference_forward(x, w_ih, w_hh, b_ih, b_hh, w_out, b_out)
    assert out.shape == (seq_len, batch, output_size)
    assert jnp.allclose(out, ref, atol=1e-5, rtol=1e-5), "mismatch vs reference"

    print("KERNEL_OK")
</pallas_src>

<mosaic_0001>
module attributes {stable_mosaic.version = 11 : i64} {
  func.func @_lstm_kernel(%arg0: memref<8x16xf32, #tpu.memory_space<vmem>>, %arg1: memref<48x128xf32, #tpu.memory_space<vmem>>, %arg2: memref<1x128xf32, #tpu.memory_space<vmem>>, %arg3: memref<32x16xf32, #tpu.memory_space<vmem>>, %arg4: memref<1x16xf32, #tpu.memory_space<vmem>>, %arg5: memref<8x16xf32, #tpu.memory_space<vmem>>, %arg6: memref<8x32xf32, #tpu.memory_space<vmem>>) attributes {dimension_semantics = [], scalar_prefetch = 0 : i64, scratch_operands = 1 : i64, tpu.core_type = #tpu.core_type<tc>} {
    %0 = tpu.iota {dimensions = array<i32: 1>} : vector<1x128xi32>
    %c64_i32 = arith.constant 64 : i32
    %1 = vector.broadcast %c64_i32 : i32 to vector<1x128xi32>
    %2 = arith.cmpi sge, %0, %1 : vector<1x128xi32>
    %c96_i32 = arith.constant 96 : i32
    %3 = vector.broadcast %c96_i32 : i32 to vector<1x128xi32>
    %4 = arith.cmpi slt, %0, %3 : vector<1x128xi32>
    %5 = arith.andi %2, %4 : vector<1x128xi1>
    %c0 = arith.constant 0 : index
    %c0_0 = arith.constant 0 : index
    %6 = vector.load %arg1[%c0, %c0_0] : memref<48x128xf32, #tpu.memory_space<vmem>>, vector<48x128xf32>
    %c0_1 = arith.constant 0 : index
    %c0_2 = arith.constant 0 : index
    %7 = vector.load %arg2[%c0_1, %c0_2] : memref<1x128xf32, #tpu.memory_space<vmem>>, vector<1x128xf32>
    %cst = arith.constant 0.000000e+00 : f32
    %8 = vector.broadcast %cst : f32 to vector<1x32xf32>
    %cst_3 = arith.constant 0.000000e+00 : f32
    %9 = vector.broadcast %cst_3 : f32 to vector<1x32xf32>
    %c0_i32 = arith.constant 0 : i32
    %c1_i32 = arith.constant 1 : i32
    %10 = arith.muli %c0_i32, %c1_i32 : i32
    %11 = arith.index_cast %10 : i32 to index
    %c0_4 = arith.constant 0 : index
    %12 = vector.load %arg0[%11, %c0_4] : memref<8x16xf32, #tpu.memory_space<vmem>>, vector<1x16xf32>
    %13 = tpu.concatenate %12, %8 in 1 : vector<1x16xf32>, vector<1x32xf32> -> vector<1x48xf32>
    %cst_5 = arith.constant dense<0.000000e+00> : vector<1x128xf32>
    %14 = tpu.matmul %13, %6, %cst_5 {dimension_numbers = #tpu.dot_dimension_numbers<[1], [0], [0], [1], [0, 0, 1, 1], [], []>} : vector<1x48xf32>, vector<48x128xf32>, vector<1x128xf32> -> vector<1x128xf32>
    %15 = arith.addf %14, %7 : vector<1x128xf32>
    %16 = math.tanh %15 : vector<1x128xf32>
    %17 = arith.negf %15 : vector<1x128xf32>
    %18 = math.exp %17 : vector<1x128xf32>
    %cst_6 = arith.constant 1.000000e+00 : f32
    %19 = vector.broadcast %cst_6 : f32 to vector<1x128xf32>
    %20 = arith.addf %19, %18 : vector<1x128xf32>
    %21 = arith.divf %19, %20 : vector<1x128xf32>
    %22 = arith.select %5, %16, %21 : vector<1x128xi1>, vector<1x128xf32>
    %23 = vector.extract_strided_slice %22 {offsets = [0, 0], sizes = [1, 32], strides = [1, 1]} : vector<1x128xf32> to vector<1x32xf32>
    %24 = vector.extract_strided_slice %22 {offsets = [0, 32], sizes = [1, 32], strides = [1, 1]} : vector<1x128xf32> to vector<1x32xf32>
    %25 = vector.extract_strided_slice %22 {offsets = [0, 64], sizes = [1, 32], strides = [1, 1]} : vector<1x128xf32> to vector<1x32xf32>
    %26 = vector.extract_strided_slice %22 {offsets = [0, 96], sizes = [1, 32], strides = [1, 1]} : vector<1x128xf32> to vector<1x32xf32>
    %27 = arith.mulf %24, %9 : vector<1x32xf32>
    %28 = arith.mulf %23, %25 : vector<1x32xf32>
    %29 = arith.addf %27, %28 : vector<1x32xf32>
    %30 = math.tanh %29 : vector<1x32xf32>
    %31 = arith.mulf %26, %30 : vector<1x32xf32>
    %c1_i32_7 = arith.constant 1 : i32
    %32 = arith.muli %c0_i32, %c1_i32_7 : i32
    %33 = arith.index_cast %32 : i32 to index
    %c0_8 = arith.constant 0 : index
    %34 = vector.load %arg6[%33, %c0_8] : memref<8x32xf32, #tpu.memory_space<vmem>>, vector<1x32xf32>
    tpu.vector_store %arg6[%33, %c0_8], %31 {strides = array<i32>} : memref<8x32xf32, #tpu.memory_space<vmem>>, vector<1x32xf32>,
    %c1_i32_9 = arith.constant 1 : i32
    %c1_i32_10 = arith.constant 1 : i32
    %35 = arith.muli %c1_i32_9, %c1_i32_10 : i32
    %36 = arith.index_cast %35 : i32 to index
    %c0_11 = arith.constant 0 : index
    %37 = vector.load %arg0[%36, %c0_11] : memref<8x16xf32, #tpu.memory_space<vmem>>, vector<1x16xf32>
    %38 = tpu.concatenate %37, %31 in 1 : vector<1x16xf32>, vector<1x32xf32> -> vector<1x48xf32>
    %cst_12 = arith.constant dense<0.000000e+00> : vector<1x128xf32>
    %39 = tpu.matmul %38, %6, %cst_12 {dimension_numbers = #tpu.dot_dimension_numbers<[1], [0], [0], [1], [0, 0, 1, 1], [], []>} : vector<1x48xf32>, vector<48x128xf32>, vector<1x128xf32> -> vector<1x128xf32>
    %40 = arith.addf %39, %7 : vector<1x128xf32>
    %41 = math.tanh %40 : vector<1x128xf32>
    %42 = arith.negf %40 : vector<1x128xf32>
    %43 = math.exp %42 : vector<1x128xf32>
    %cst_13 = arith.constant 1.000000e+00 : f32
    %44 = vector.broadcast %cst_13 : f32 to vector<1x128xf32>
    %45 = arith.addf %44, %43 : vector<1x128xf32>
    %46 = arith.divf %44, %45 : vector<1x128xf32>
    %47 = arith.select %5, %41, %46 : vector<1x128xi1>, vector<1x128xf32>
    %48 = vector.extract_strided_slice %47 {offsets = [0, 0], sizes = [1, 32], strides = [1, 1]} : vector<1x128xf32> to vector<1x32xf32>
    %49 = vector.extract_strided_slice %47 {offsets = [0, 32], sizes = [1, 32], strides = [1, 1]} : vector<1x128xf32> to vector<1x32xf32>
    %50 = vector.extract_strided_slice %47 {offsets = [0, 64], sizes = [1, 32], strides = [1, 1]} : vector<1x128xf32> to vector<1x32xf32>
    %51 = vector.extract_strided_slice %47 {offsets = [0, 96], sizes = [1, 32], strides = [1, 1]} : vector<1x128xf32> to vector<1x32xf32>
    %52 = arith.mulf %49, %29 : vector<1x32xf32>
    %53 = arith.mulf %48, %50 : vector<1x32xf32>
    %54 = arith.addf %52, %53 : vector<1x32xf32>
    %55 = math.tanh %54 : vector<1x32xf32>
    %56 = arith.mulf %51, %55 : vector<1x32xf32>
    %c1_i32_14 = arith.constant 1 : i32
    %57 = arith.muli %c1_i32_9, %c1_i32_14 : i32
    %58 = arith.index_cast %57 : i32 to index
    %c0_15 = arith.constant 0 : index
    %59 = vector.load %arg6[%58, %c0_15] : memref<8x32xf32, #tpu.memory_space<vmem>>, vector<1x32xf32>
    tpu.vector_store %arg6[%58, %c0_15], %56 {strides = array<i32>} : memref<8x32xf32, #tpu.memory_space<vmem>>, vector<1x32xf32>,
    %c2_i32 = arith.constant 2 : i32
    %c1_i32_16 = arith.constant 1 : i32
    %60 = arith.muli %c2_i32, %c1_i32_16 : i32
    %61 = arith.index_cast %60 : i32 to index
    %c0_17 = arith.constant 0 : index
    %62 = vector.load %arg0[%61, %c0_17] : memref<8x16xf32, #tpu.memory_space<vmem>>, vector<1x16xf32>
    %63 = tpu.concatenate %62, %56 in 1 : vector<1x16xf32>, vector<1x32xf32> -> vector<1x48xf32>
    %cst_18 = arith.constant dense<0.000000e+00> : vector<1x128xf32>
    %64 = tpu.matmul %63, %6, %cst_18 {dimension_numbers = #tpu.dot_dimension_numbers<[1], [0], [0], [1], [0, 0, 1, 1], [], []>} : vector<1x48xf32>, vector<48x128xf32>, vector<1x128xf32> -> vector<1x128xf32>
    %65 = arith.addf %64, %7 : vector<1x128xf32>
    %66 = math.tanh %65 : vector<1x128xf32>
    %67 = arith.negf %65 : vector<1x128xf32>
    %68 = math.exp %67 : vector<1x128xf32>
    %cst_19 = arith.constant 1.000000e+00 : f32
    %69 = vector.broadcast %cst_19 : f32 to vector<1x128xf32>
    %70 = arith.addf %69, %68 : vector<1x128xf32>
    %71 = arith.divf %69, %70 : vector<1x128xf32>
    %72 = arith.select %5, %66, %71 : vector<1x128xi1>, vector<1x128xf32>
    %73 = vector.extract_strided_slice %72 {offsets = [0, 0], sizes = [1, 32], strides = [1, 1]} : vector<1x128xf32> to vector<1x32xf32>
    %74 = vector.extract_strided_slice %72 {offsets = [0, 32], sizes = [1, 32], strides = [1, 1]} : vector<1x128xf32> to vector<1x32xf32>
    %75 = vector.extract_strided_slice %72 {offsets = [0, 64], sizes = [1, 32], strides = [1, 1]} : vector<1x128xf32> to vector<1x32xf32>
    %76 = vector.extract_strided_slice %72 {offsets = [0, 96], sizes = [1, 32], strides = [1, 1]} : vector<1x128xf32> to vector<1x32xf32>
    %77 = arith.mulf %74, %54 : vector<1x32xf32>
    %78 = arith.mulf %73, %75 : vector<1x32xf32>
    %79 = arith.addf %77, %78 : vector<1x32xf32>
    %80 = math.tanh %79 : vector<1x32xf32>
    %81 = arith.mulf %76, %80 : vector<1x32xf32>
    %c1_i32_20 = arith.constant 1 : i32
    %82 = arith.muli %c2_i32, %c1_i32_20 : i32
    %83 = arith.index_cast %82 : i32 to index
    %c0_21 = arith.constant 0 : index
    %84 = vector.load %arg6[%83, %c0_21] : memref<8x32xf32, #tpu.memory_space<vmem>>, vector<1x32xf32>
    tpu.vector_store %arg6[%83, %c0_21], %81 {strides = array<i32>} : memref<8x32xf32, #tpu.memory_space<vmem>>, vector<1x32xf32>,
    %c3_i32 = arith.constant 3 : i32
    %c1_i32_22 = arith.constant 1 : i32
    %85 = arith.muli %c3_i32, %c1_i32_22 : i32
    %86 = arith.index_cast %85 : i32 to index
    %c0_23 = arith.constant 0 : index
    %87 = vector.load %arg0[%86, %c0_23] : memref<8x16xf32, #tpu.memory_space<vmem>>, vector<1x16xf32>
    %88 = tpu.concatenate %87, %81 in 1 : vector<1x16xf32>, vector<1x32xf32> -> vector<1x48xf32>
    %cst_24 = arith.constant dense<0.000000e+00> : vector<1x128xf32>
    %89 = tpu.matmul %88, %6, %cst_24 {dimension_numbers = #tpu.dot_dimension_numbers<[1], [0], [0], [1], [0, 0, 1, 1], [], []>} : vector<1x48xf32>, vector<48x128xf32>, vector<1x128xf32> -> vector<1x128xf32>
    %90 = arith.addf %89, %7 : vector<1x128xf32>
    %91 = math.tanh %90 : vector<1x128xf32>
    %92 = arith.negf %90 : vector<1x128xf32>
    %93 = math.exp %92 : vector<1x128xf32>
    %cst_25 = arith.constant 1.000000e+00 : f32
    %94 = vector.broadcast %cst_25 : f32 to vector<1x128xf32>
    %95 = arith.addf %94, %93 : vector<1x128xf32>
    %96 = arith.divf %94, %95 : vector<1x128xf32>
    %97 = arith.select %5, %91, %96 : vector<1x128xi1>, vector<1x128xf32>
    %98 = vector.extract_strided_slice %97 {offsets = [0, 0], sizes = [1, 32], strides = [1, 1]} : vector<1x128xf32> to vector<1x32xf32>
    %99 = vector.extract_strided_slice %97 {offsets = [0, 32], sizes = [1, 32], strides = [1, 1]} : vector<1x128xf32> to vector<1x32xf32>
    %100 = vector.extract_strided_slice %97 {offsets = [0, 64], sizes = [1, 32], strides = [1, 1]} : vector<1x128xf32> to vector<1x32xf32>
    %101 = vector.extract_strided_slice %97 {offsets = [0, 96], sizes = [1, 32], strides = [1, 1]} : vector<1x128xf32> to vector<1x32xf32>
    %102 = arith.mulf %99, %79 : vector<1x32xf32>
    %103 = arith.mulf %98, %100 : vector<1x32xf32>
    %104 = arith.addf %102, %103 : vector<1x32xf32>
    %105 = math.tanh %104 : vector<1x32xf32>
    %106 = arith.mulf %101, %105 : vector<1x32xf32>
    %c1_i32_26 = arith.constant 1 : i32
    %107 = arith.muli %c3_i32, %c1_i32_26 : i32
    %108 = arith.index_cast %107 : i32 to index
    %c0_27 = arith.constant 0 : index
    %109 = vector.load %arg6[%108, %c0_27] : memref<8x32xf32, #tpu.memory_space<vmem>>, vector<1x32xf32>
    tpu.vector_store %arg6[%108, %c0_27], %106 {strides = array<i32>} : memref<8x32xf32, #tpu.memory_space<vmem>>, vector<1x32xf32>,
    %c4_i32 = arith.constant 4 : i32
    %c1_i32_28 = arith.constant 1 : i32
    %110 = arith.muli %c4_i32, %c1_i32_28 : i32
    %111 = arith.index_cast %110 : i32 to index
    %c0_29 = arith.constant 0 : index
    %112 = vector.load %arg0[%111, %c0_29] : memref<8x16xf32, #tpu.memory_space<vmem>>, vector<1x16xf32>
    %113 = tpu.concatenate %112, %106 in 1 : vector<1x16xf32>, vector<1x32xf32> -> vector<1x48xf32>
    %cst_30 = arith.constant dense<0.000000e+00> : vector<1x128xf32>
    %114 = tpu.matmul %113, %6, %cst_30 {dimension_numbers = #tpu.dot_dimension_numbers<[1], [0], [0], [1], [0, 0, 1, 1], [], []>} : vector<1x48xf32>, vector<48x128xf32>, vector<1x128xf32> -> vector<1x128xf32>
    %115 = arith.addf %114, %7 : vector<1x128xf32>
    %116 = math.tanh %115 : vector<1x128xf32>
    %117 = arith.negf %115 : vector<1x128xf32>
    %118 = math.exp %117 : vector<1x128xf32>
    %cst_31 = arith.constant 1.000000e+00 : f32
    %119 = vector.broadcast %cst_31 : f32 to vector<1x128xf32>
    %120 = arith.addf %119, %118 : vector<1x128xf32>
    %121 = arith.divf %119, %120 : vector<1x128xf32>
    %122 = arith.select %5, %116, %121 : vector<1x128xi1>, vector<1x128xf32>
    %123 = vector.extract_strided_slice %122 {offsets = [0, 0], sizes = [1, 32], strides = [1, 1]} : vector<1x128xf32> to vector<1x32xf32>
    %124 = vector.extract_strided_slice %122 {offsets = [0, 32], sizes = [1, 32], strides = [1, 1]} : vector<1x128xf32> to vector<1x32xf32>
    %125 = vector.extract_strided_slice %122 {offsets = [0, 64], sizes = [1, 32], strides = [1, 1]} : vector<1x128xf32> to vector<1x32xf32>
    %126 = vector.extract_strided_slice %122 {offsets = [0, 96], sizes = [1, 32], strides = [1, 1]} : vector<1x128xf32> to vector<1x32xf32>
    %127 = arith.mulf %124, %104 : vector<1x32xf32>
    %128 = arith.mulf %123, %125 : vector<1x32xf32>
    %129 = arith.addf %127, %128 : vector<1x32xf32>
    %130 = math.tanh %129 : vector<1x32xf32>
    %131 = arith.mulf %126, %130 : vector<1x32xf32>
    %c1_i32_32 = arith.constant 1 : i32
    %132 = arith.muli %c4_i32, %c1_i32_32 : i32
    %133 = arith.index_cast %132 : i32 to index
    %c0_33 = arith.constant 0 : index
    %134 = vector.load %arg6[%133, %c0_33] : memref<8x32xf32, #tpu.memory_space<vmem>>, vector<1x32xf32>
    tpu.vector_store %arg6[%133, %c0_33], %131 {strides = array<i32>} : memref<8x32xf32, #tpu.memory_space<vmem>>, vector<1x32xf32>,
    %c5_i32 = arith.constant 5 : i32
    %c1_i32_34 = arith.constant 1 : i32
    %135 = arith.muli %c5_i32, %c1_i32_34 : i32
    %136 = arith.index_cast %135 : i32 to index
    %c0_35 = arith.constant 0 : index
    %137 = vector.load %arg0[%136, %c0_35] : memref<8x16xf32, #tpu.memory_space<vmem>>, vector<1x16xf32>
    %138 = tpu.concatenate %137, %131 in 1 : vector<1x16xf32>, vector<1x32xf32> -> vector<1x48xf32>
    %cst_36 = arith.constant dense<0.000000e+00> : vector<1x128xf32>
    %139 = tpu.matmul %138, %6, %cst_36 {dimension_numbers = #tpu.dot_dimension_numbers<[1], [0], [0], [1], [0, 0, 1, 1], [], []>} : vector<1x48xf32>, vector<48x128xf32>, vector<1x128xf32> -> vector<1x128xf32>
    %140 = arith.addf %139, %7 : vector<1x128xf32>
    %141 = math.tanh %140 : vector<1x128xf32>
    %142 = arith.negf %140 : vector<1x128xf32>
    %143 = math.exp %142 : vector<1x128xf32>
    %cst_37 = arith.constant 1.000000e+00 : f32
    %144 = vector.broadcast %cst_37 : f32 to vector<1x128xf32>
    %145 = arith.addf %144, %143 : vector<1x128xf32>
    %146 = arith.divf %144, %145 : vector<1x128xf32>
    %147 = arith.select %5, %141, %146 : vector<1x128xi1>, vector<1x128xf32>
    %148 = vector.extract_strided_slice %147 {offsets = [0, 0], sizes = [1, 32], strides = [1, 1]} : vector<1x128xf32> to vector<1x32xf32>
    %149 = vector.extract_strided_slice %147 {offsets = [0, 32], sizes = [1, 32], strides = [1, 1]} : vector<1x128xf32> to vector<1x32xf32>
    %150 = vector.extract_strided_slice %147 {offsets = [0, 64], sizes = [1, 32], strides = [1, 1]} : vector<1x128xf32> to vector<1x32xf32>
    %151 = vector.extract_strided_slice %147 {offsets = [0, 96], sizes = [1, 32], strides = [1, 1]} : vector<1x128xf32> to vector<1x32xf32>
    %152 = arith.mulf %149, %129 : vector<1x32xf32>
    %153 = arith.mulf %148, %150 : vector<1x32xf32>
    %154 = arith.addf %152, %153 : vector<1x32xf32>
    %155 = math.tanh %154 : vector<1x32xf32>
    %156 = arith.mulf %151, %155 : vector<1x32xf32>
    %c1_i32_38 = arith.constant 1 : i32
    %157 = arith.muli %c5_i32, %c1_i32_38 : i32
    %158 = arith.index_cast %157 : i32 to index
    %c0_39 = arith.constant 0 : index
    %159 = vector.load %arg6[%158, %c0_39] : memref<8x32xf32, #tpu.memory_space<vmem>>, vector<1x32xf32>
    tpu.vector_store %arg6[%158, %c0_39], %156 {strides = array<i32>} : memref<8x32xf32, #tpu.memory_space<vmem>>, vector<1x32xf32>,
    %c6_i32 = arith.constant 6 : i32
    %c1_i32_40 = arith.constant 1 : i32
    %160 = arith.muli %c6_i32, %c1_i32_40 : i32
    %161 = arith.index_cast %160 : i32 to index
    %c0_41 = arith.constant 0 : index
    %162 = vector.load %arg0[%161, %c0_41] : memref<8x16xf32, #tpu.memory_space<vmem>>, vector<1x16xf32>
    %163 = tpu.concatenate %162, %156 in 1 : vector<1x16xf32>, vector<1x32xf32> -> vector<1x48xf32>
    %cst_42 = arith.constant dense<0.000000e+00> : vector<1x128xf32>
    %164 = tpu.matmul %163, %6, %cst_42 {dimension_numbers = #tpu.dot_dimension_numbers<[1], [0], [0], [1], [0, 0, 1, 1], [], []>} : vector<1x48xf32>, vector<48x128xf32>, vector<1x128xf32> -> vector<1x128xf32>
    %165 = arith.addf %164, %7 : vector<1x128xf32>
    %166 = math.tanh %165 : vector<1x128xf32>
    %167 = arith.negf %165 : vector<1x128xf32>
    %168 = math.exp %167 : vector<1x128xf32>
    %cst_43 = arith.constant 1.000000e+00 : f32
    %169 = vector.broadcast %cst_43 : f32 to vector<1x128xf32>
    %170 = arith.addf %169, %168 : vector<1x128xf32>
    %171 = arith.divf %169, %170 : vector<1x128xf32>
    %172 = arith.select %5, %166, %171 : vector<1x128xi1>, vector<1x128xf32>
    %173 = vector.extract_strided_slice %172 {offsets = [0, 0], sizes = [1, 32], strides = [1, 1]} : vector<1x128xf32> to vector<1x32xf32>
    %174 = vector.extract_strided_slice %172 {offsets = [0, 32], sizes = [1, 32], strides = [1, 1]} : vector<1x128xf32> to vector<1x32xf32>
    %175 = vector.extract_strided_slice %172 {offsets = [0, 64], sizes = [1, 32], strides = [1, 1]} : vector<1x128xf32> to vector<1x32xf32>
    %176 = vector.extract_strided_slice %172 {offsets = [0, 96], sizes = [1, 32], strides = [1, 1]} : vector<1x128xf32> to vector<1x32xf32>
    %177 = arith.mulf %174, %154 : vector<1x32xf32>
    %178 = arith.mulf %173, %175 : vector<1x32xf32>
    %179 = arith.addf %177, %178 : vector<1x32xf32>
    %180 = math.tanh %179 : vector<1x32xf32>
    %181 = arith.mulf %176, %180 : vector<1x32xf32>
    %c1_i32_44 = arith.constant 1 : i32
    %182 = arith.muli %c6_i32, %c1_i32_44 : i32
    %183 = arith.index_cast %182 : i32 to index
    %c0_45 = arith.constant 0 : index
    %184 = vector.load %arg6[%183, %c0_45] : memref<8x32xf32, #tpu.memory_space<vmem>>, vector<1x32xf32>
    tpu.vector_store %arg6[%183, %c0_45], %181 {strides = array<i32>} : memref<8x32xf32, #tpu.memory_space<vmem>>, vector<1x32xf32>,
    %c7_i32 = arith.constant 7 : i32
    %c1_i32_46 = arith.constant 1 : i32
    %185 = arith.muli %c7_i32, %c1_i32_46 : i32
    %186 = arith.index_cast %185 : i32 to index
    %c0_47 = arith.constant 0 : index
    %187 = vector.load %arg0[%186, %c0_47] : memref<8x16xf32, #tpu.memory_space<vmem>>, vector<1x16xf32>
    %188 = tpu.concatenate %187, %181 in 1 : vector<1x16xf32>, vector<1x32xf32> -> vector<1x48xf32>
    %cst_48 = arith.constant dense<0.000000e+00> : vector<1x128xf32>
    %189 = tpu.matmul %188, %6, %cst_48 {dimension_numbers = #tpu.dot_dimension_numbers<[1], [0], [0], [1], [0, 0, 1, 1], [], []>} : vector<1x48xf32>, vector<48x128xf32>, vector<1x128xf32> -> vector<1x128xf32>
    %190 = arith.addf %189, %7 : vector<1x128xf32>
    %191 = math.tanh %190 : vector<1x128xf32>
    %192 = arith.negf %190 : vector<1x128xf32>
    %193 = math.exp %192 : vector<1x128xf32>
    %cst_49 = arith.constant 1.000000e+00 : f32
    %194 = vector.broadcast %cst_49 : f32 to vector<1x128xf32>
    %195 = arith.addf %194, %193 : vector<1x128xf32>
    %196 = arith.divf %194, %195 : vector<1x128xf32>
    %197 = arith.select %5, %191, %196 : vector<1x128xi1>, vector<1x128xf32>
    %198 = vector.extract_strided_slice %197 {offsets = [0, 0], sizes = [1, 32], strides = [1, 1]} : vector<1x128xf32> to vector<1x32xf32>
    %199 = vector.extract_strided_slice %197 {offsets = [0, 32], sizes = [1, 32], strides = [1, 1]} : vector<1x128xf32> to vector<1x32xf32>
    %200 = vector.extract_strided_slice %197 {offsets = [0, 64], sizes = [1, 32], strides = [1, 1]} : vector<1x128xf32> to vector<1x32xf32>
    %201 = vector.extract_strided_slice %197 {offsets = [0, 96], sizes = [1, 32], strides = [1, 1]} : vector<1x128xf32> to vector<1x32xf32>
    %202 = arith.mulf %199, %179 : vector<1x32xf32>
    %203 = arith.mulf %198, %200 : vector<1x32xf32>
    %204 = arith.addf %202, %203 : vector<1x32xf32>
    %205 = math.tanh %204 : vector<1x32xf32>
    %206 = arith.mulf %201, %205 : vector<1x32xf32>
    %c1_i32_50 = arith.constant 1 : i32
    %207 = arith.muli %c7_i32, %c1_i32_50 : i32
    %208 = arith.index_cast %207 : i32 to index
    %c0_51 = arith.constant 0 : index
    %209 = vector.load %arg6[%208, %c0_51] : memref<8x32xf32, #tpu.memory_space<vmem>>, vector<1x32xf32>
    tpu.vector_store %arg6[%208, %c0_51], %206 {strides = array<i32>} : memref<8x32xf32, #tpu.memory_space<vmem>>, vector<1x32xf32>,
    %c8_i32 = arith.constant 8 : i32
    %c0_52 = arith.constant 0 : index
    %c0_53 = arith.constant 0 : index
    %210 = vector.load %arg6[%c0_52, %c0_53] : memref<8x32xf32, #tpu.memory_space<vmem>>, vector<8x32xf32>
    %c0_54 = arith.constant 0 : index
    %c0_55 = arith.constant 0 : index
    %211 = vector.load %arg3[%c0_54, %c0_55] : memref<32x16xf32, #tpu.memory_space<vmem>>, vector<32x16xf32>
    %cst_56 = arith.constant dense<0.000000e+00> : vector<8x16xf32>
    %212 = tpu.matmul %210, %211, %cst_56 {dimension_numbers = #tpu.dot_dimension_numbers<[1], [0], [0], [1], [0, 0, 1, 1], [], []>} : vector<8x32xf32>, vector<32x16xf32>, vector<8x16xf32> -> vector<8x16xf32>
    %c0_57 = arith.constant 0 : index
    %c0_58 = arith.constant 0 : index
    %213 = vector.load %arg4[%c0_57, %c0_58] : memref<1x16xf32, #tpu.memory_space<vmem>>, vector<1x16xf32>
    %214 = vector.broadcast %213 : vector<1x16xf32> to vector<8x16xf32>
    %215 = arith.addf %212, %214 : vector<8x16xf32>
    %c0_59 = arith.constant 0 : index
    %c0_60 = arith.constant 0 : index
    %216 = vector.load %arg5[%c0_59, %c0_60] : memref<8x16xf32, #tpu.memory_space<vmem>>, vector<8x16xf32>
    tpu.vector_store %arg5[%c0_59, %c0_60], %215 {strides = array<i32>} : memref<8x16xf32, #tpu.memory_space<vmem>>, vector<8x16xf32>,
    return
  }
}

</mosaic_0001>

<llo_original>
// kernel: tpu_custom_call.1
$region0: #{tpu_custom_call.1}
  #allocation0 [shape = 'u32[]', space=smem, size = 0x4, offset = 0x4, fixed_abs, tag = 'smem constant byte address 0x4 - core index']
  #allocation1 [shape = 'u32[144,128]{1,0:T(1,128)}', space=vmem, size = 0x12000, scoped, tag = 'internal scratch']
  #allocation2 [shape = 'f32[8,32]{1,0:T(8,128)}', space=vmem, size = 0x1000, scoped, tag = 'scratch operand']
  %s0 = inlined_call_operand.hbm [shape: f32[8,16], index: 0, kind: input, shape index: {}]
  %s1 = inlined_call_operand.vmem [shape: f32[48,128], index: 1, kind: input, shape index: {}]
  %s2 = inlined_call_operand.vmem [shape: f32[1,128], index: 2, kind: input, shape index: {}]
  %s3 = inlined_call_operand.vmem [shape: f32[32,16], index: 3, kind: input, shape index: {}]
  %s4 = inlined_call_operand.vmem [shape: f32[1,16], index: 4, kind: input, shape index: {}]
  %s5 = inlined_call_operand.hbm [shape: f32[8,16], index: 5, kind: output, shape index: {}]
  %s6 = sld [smem:[#allocation0]]
  $region34: #{tpu_custom_call.1} parent=0
    _
  %s8 = ssub.s32 1, %s6
  %s9 = scalar_select 0, %s8, %s6
  $region1: #{tpu_custom_call.1} parent=0
    #allocation3 [shape = 'u8[4096]{0}', space=vmem, size = 0x1000, scoped, tag = 'input window, operand 0, single buffered']
    #allocation4 [shape = 's32[1]{0}', space=sflag, size = 0x4, scoped, tag = 'scoped memory for tpu_custom_call.1']
    #allocation5 [shape = 's32[1]{0}', space=sflag, size = 0x4, scoped, tag = 'scoped memory for tpu_custom_call.1']
    #allocation6 [shape = 'u8[4096]{0}', space=vmem, size = 0x1000, scoped, tag = 'output window, operand 0, single buffered']
    %10 = vsyncpa [#allocation4], 0
    %11 = vsyncpa [#allocation5], 0
    // Predicated region
    $region2: #{tpu_custom_call.1} parent=1 // pred_check
      _
    $region3: #{tpu_custom_call.1} parent=1 // pred_check_branch
      %13 = sbr.rel (0) target = $region5
    $region4: #{tpu_custom_call.1} parent=1 // pred_region
      %s15 = ssub.s32 128, 128
      %16 = vsyncadd [#allocation4], %s15
      %s18 = sshll.u32 [#allocation3], 4
      %s19 = int_to_ptr.vmem [resolvable:$true] %s18
      %21 = dma.hbm_to_vmem [thread:$0]  %s0, 128, %s19, [#allocation4]
    $region5: #{tpu_custom_call.1} parent=1 // pred_fallthru
      _
    // Predicated region
    $region6: #{tpu_custom_call.1} parent=1 // pred_check
      _
    $region7: #{tpu_custom_call.1} parent=1 // pred_check_branch
      %23 = sbr.rel (0) target = $region9
    $region8: #{tpu_custom_call.1} parent=1 // pred_region
      _
    $region9: #{tpu_custom_call.1} parent=1 // pred_fallthru
      _
    // Predicated region
    $region10: #{tpu_custom_call.1} parent=1 // pred_check
      _
    $region11: #{tpu_custom_call.1} parent=1 // pred_check_branch
      %25 = sbr.rel (0) target = $region13
    $region12: #{tpu_custom_call.1} parent=1 // pred_region
      _
    $region13: #{tpu_custom_call.1} parent=1 // pred_fallthru
      _
    // Predicated region
    $region14: #{tpu_custom_call.1} parent=1 // pred_check
      _
    $region15: #{tpu_custom_call.1} parent=1 // pred_check_branch
      %27 = sbr.rel (0) target = $region17
    $region16: #{tpu_custom_call.1} parent=1 // pred_region
      _
    $region17: #{tpu_custom_call.1} parent=1 // pred_fallthru
      _
    // Predicated region
    $region18: #{tpu_custom_call.1} parent=1 // pred_check
      _
    $region19: #{tpu_custom_call.1} parent=1 // pred_check_branch
      %29 = sbr.rel (0) target = $region21
    $region20: #{tpu_custom_call.1} parent=1 // pred_region
      _
    $region21: #{tpu_custom_call.1} parent=1 // pred_fallthru
      _
    // Predicated region
    $region22: #{tpu_custom_call.1} parent=1 // pred_check
      _
    $region23: #{tpu_custom_call.1} parent=1 // pred_check_branch
      %31 = sbr.rel (0) target = $region25
    $region24: #{tpu_custom_call.1} parent=1 // pred_region
      %32 = dma.done [#allocation4], 128
    $region25: #{tpu_custom_call.1} parent=1 // pred_fallthru
      _
    %v33 = vlaneseq
    %v34 = vand.u32 %v33, 127
    %vm35 = vcmp.ge.s32.totalorder %v34, 64
    %vm36 = vcmp.lt.s32.totalorder %v34, 96
    %vm37 = vmand %vm35, %vm36
    %v38 = vld [vmem:[%s1] sm:$0xff]
    %v39 = vld [vmem:[%s1 + $0x8] sm:$0xff]
    %v40 = vld [vmem:[%s1 + $0x10] sm:$0xff]
    %v41 = vld [vmem:[%s1 + $0x18] sm:$0xff]
    %v42 = vld [vmem:[%s1 + $0x20] sm:$0xff]
    %v43 = vld [vmem:[%s1 + $0x28] sm:$0xff]
    %v44 = vld [vmem:[%s2] sm:$0x1]
    %v45 = vld [vmem:[#allocation3] sm:$0x1]
    %vm46 = vcmask 130048
    %v47 = vsel %vm46, %v45, 0.0
    %vm48 = vcmask 392192
    %v50 = vsel %vm48, %v47, 0
    %52 = vmatprep.subr.mxu0 0.0
    %53 = vmatpush1.msra.mxu0 %v38
    %54 = vmatprep.subr.mxu0 0.0
    %55 = vmatpush1.msra.mxu0 %v39
    %56 = vmatprep.subr.mxu0 0.0
    %57 = vmatpush1.msra.mxu0 %v40
    %58 = vmatprep.subr.mxu0 0.0
    %59 = vmatpush1.msra.mxu0 %v41
    %60 = vmatprep.subr.mxu0 0.0
    %61 = vmatpush1.msra.mxu0 %v42
    %62 = vmatprep.subr.mxu0 0.0
    %63 = vmatpush1.msra.mxu0 %v43
    %64 = vmatprep.subr.mxu0 0.0
    %65 = vmatpush1.msra.mxu0 0.0
    %66 = vmatprep.subr.mxu0 0.0
    %67 = vmatpush1.msra.mxu0 0.0
    %68 = vmatprep.subr.mxu0 0.0
    %69 = vmatpush1.msra.mxu0 0.0
    %70 = vmatprep.subr.mxu0 0.0
    %71 = vmatpush1.msra.mxu0 0.0
    %72 = vmatprep.subr.mxu0 0.0
    %73 = vmatpush1.msra.mxu0 0.0
    %74 = vmatprep.subr.mxu0 0.0
    %75 = vmatpush1.msra.mxu0 0.0
    %76 = vmatprep.subr.mxu0 0.0
    %77 = vmatpush1.msra.mxu0 0.0
    %78 = vmatprep.subr.mxu0 0.0
    %79 = vmatpush1.msra.mxu0 0.0
    %80 = vmatprep.subr.mxu0 0.0
    %81 = vmatpush1.msra.mxu0 0.0
    %82 = vmatprep.subr.mxu0 0.0
    %83 = vmatpush1.msra.mxu0 0.0
    %84 = vmatprep.subr.mxu0 0.0
    %85 = vmatpush1.msra.mxu0 0.0
    %86 = vmatprep.subr.mxu0 0.0
    %87 = vmatpush1.msra.mxu0 0.0
    %88 = vmatprep.subr.mxu0 0.0
    %89 = vmatpush1.msra.mxu0 0.0
    %90 = vmatprep.subr.mxu0 0.0
    %91 = vmatpush1.msra.mxu0 0.0
    %92 = vmatprep.subr.mxu0 0.0
    %93 = vmatpush1.msra.mxu0 0.0
    %94 = vmatprep.subr.mxu0 0.0
    %95 = vmatpush1.msra.mxu0 0.0
    %96 = vmatprep.subr.mxu0 0.0
    %97 = vmatpush1.msra.mxu0 0.0
    %98 = vmatprep.subr.mxu0 0.0
    %99 = vmatpush1.msra.mxu0 0.0
    %100 = vmatprep.subr.mxu0 0.0
    %101 = vmatpush1.msra.mxu0 0.0
    %102 = vmatprep.subr.mxu0 0.0
    %103 = vmatpush1.msra.mxu0 0.0
    %104 = vmatprep.subr.mxu0 0.0
    %105 = vmatpush1.msra.mxu0 0.0
    %106 = vmatprep.subr.mxu0 0.0
    %107 = vmatpush1.msra.mxu0 0.0
    %108 = vmatprep.subr.mxu0 0.0
    %109 = vmatpush1.msra.mxu0 0.0
    %110 = vmatprep.subr.mxu0 0.0
    %111 = vmatpush1.msra.mxu0 0.0
    %112 = vmatprep.subr.mxu0 0.0
    %113 = vmatpush1.msra.mxu0 0.0
    %114 = vmatprep.subr.mxu0 0.0
    %115 = vmatpush1.msra.mxu0 0.0
    %116 = vmatprep.mubr.f32.mxu0 0.0
    %117 = vmatmul.mubr.f32.gmra.mrb[0].mxu0 %v50
    %v118 = vpop.f32.mrb[0].mxu0
    %v119 = vadd.f32 %v44, %v118
    %v120 = vpop.f32.mrb[0].mxu0
    %121 = vdwg.mxu0
    %v122 = vtanh.pop %v119
    %v123 = vxor.u32 %v119, 2147483648
    %v124 = vmul.f32 %v123, 1.442695
    %v125 = vpow.pop %v124
    %v126 = vadd.f32 %v125, 1.0
    %v127 = vrcp.pop %v126
    %v128 = vmul.f32 1.0, %v127
    %v129 = vsel %vm37, %v122, %v128
    %v130 = vmul.f32 %v129, 0.0
    %132 = vrot.lane.b32.xlu0 %v129, 64
    %v133 = vpop.permute.xlu0 %132
    %v135 = vmul.f32 %v129, %v133
    %137 = vrot.lane.b32.xlu0 %v135, 32
    %v138 = vpop.permute.xlu0 %137
    %v140 = vadd.f32 %v130, %v138
    %v141 = vtanh.pop %v140
    %143 = vrot.lane.b32.xlu0 %v141, 64
    %v144 = vpop.permute.xlu0 %143
    %v146 = vmul.f32 %v129, %v144
    %148 = vrot.lane.b32.xlu0 %v146, 32
    %v149 = vpop.permute.xlu0 %148
    %vm151 = vcmask 253952
    %152 = vst.msk [vmem:[#allocation2] sm:$0x1] %vm151, %v149
    %v153 = vld [vmem:[#allocation3 + $0x1] sm:$0x1]
    %154 = vrot.lane.b32.xlu0 %v146, 48
    %v155 = vpop.permute.xlu0 %154
    %v157 = vsel %vm46, %v153, %v155
    %v159 = vsel %vm48, %v157, 0
    %161 = vmatprep.subr.mxu0 0.0
    %162 = vmatpush1.msra.mxu0 %v38
    %163 = vmatprep.subr.mxu0 0.0
    %164 = vmatpush1.msra.mxu0 %v39
    %165 = vmatprep.subr.mxu0 0.0
    %166 = vmatpush1.msra.mxu0 %v40
    %167 = vmatprep.subr.mxu0 0.0
    %168 = vmatpush1.msra.mxu0 %v41
    %169 = vmatprep.subr.mxu0 0.0
    %170 = vmatpush1.msra.mxu0 %v42
    %171 = vmatprep.subr.mxu0 0.0
    %172 = vmatpush1.msra.mxu0 %v43
    %173 = vmatprep.subr.mxu0 0.0
    %174 = vmatpush1.msra.mxu0 0.0
    %175 = vmatprep.subr.mxu0 0.0
    %176 = vmatpush1.msra.mxu0 0.0
    %177 = vmatprep.subr.mxu0 0.0
    %178 = vmatpush1.msra.mxu0 0.0
    %179 = vmatprep.subr.mxu0 0.0
    %180 = vmatpush1.msra.mxu0 0.0
    %181 = vmatprep.subr.mxu0 0.0
    %182 = vmatpush1.msra.mxu0 0.0
    %183 = vmatprep.subr.mxu0 0.0
    %184 = vmatpush1.msra.mxu0 0.0
    %185 = vmatprep.subr.mxu0 0.0
    %186 = vmatpush1.msra.mxu0 0.0
    %187 = vmatprep.subr.mxu0 0.0
    %188 = vmatpush1.msra.mxu0 0.0
    %189 = vmatprep.subr.mxu0 0.0
    %190 = vmatpush1.msra.mxu0 0.0
    %191 = vmatprep.subr.mxu0 0.0
    %192 = vmatpush1.msra.mxu0 0.0
    %193 = vmatprep.subr.mxu0 0.0
    %194 = vmatpush1.msra.mxu0 0.0
    %195 = vmatprep.subr.mxu0 0.0
    %196 = vmatpush1.msra.mxu0 0.0
    %197 = vmatprep.subr.mxu0 0.0
    %198 = vmatpush1.msra.mxu0 0.0
    %199 = vmatprep.subr.mxu0 0.0
    %200 = vmatpush1.msra.mxu0 0.0
    %201 = vmatprep.subr.mxu0 0.0
    %202 = vmatpush1.msra.mxu0 0.0
    %203 = vmatprep.subr.mxu0 0.0
    %204 = vmatpush1.msra.mxu0 0.0
    %205 = vmatprep.subr.mxu0 0.0
    %206 = vmatpush1.msra.mxu0 0.0
    %207 = vmatprep.subr.mxu0 0.0
    %208 = vmatpush1.msra.mxu0 0.0
    %209 = vmatprep.subr.mxu0 0.0
    %210 = vmatpush1.msra.mxu0 0.0
    %211 = vmatprep.subr.mxu0 0.0
    %212 = vmatpush1.msra.mxu0 0.0
    %213 = vmatprep.subr.mxu0 0.0
    %214 = vmatpush1.msra.mxu0 0.0
    %215 = vmatprep.subr.mxu0 0.0
    %216 = vmatpush1.msra.mxu0 0.0
    %217 = vmatprep.subr.mxu0 0.0
    %218 = vmatpush1.msra.mxu0 0.0
    %219 = vmatprep.subr.mxu0 0.0
    %220 = vmatpush1.msra.mxu0 0.0
    %221 = vmatprep.subr.mxu0 0.0
    %222 = vmatpush1.msra.mxu0 0.0
    %223 = vmatprep.subr.mxu0 0.0
    %224 = vmatpush1.msra.mxu0 0.0
    %225 = vmatprep.mubr.f32.mxu0 0.0
    %226 = vmatmul.mubr.f32.gmra.mrb[0].mxu0 %v159
    %v227 = vpop.f32.mrb[0].mxu0
    %v228 = vadd.f32 %v44, %v227
    %v229 = vpop.f32.mrb[0].mxu0
    %230 = vdwg.mxu0
    %v231 = vtanh.pop %v228
    %v232 = vxor.u32 %v228, 2147483648
    %v233 = vmul.f32 %v232, 1.442695
    %v234 = vpow.pop %v233
    %v235 = vadd.f32 %v234, 1.0
    %v236 = vrcp.pop %v235
    %v237 = vmul.f32 1.0, %v236
    %v238 = vsel %vm37, %v231, %v237
    %v239 = vmul.f32 %v238, %v140
    %241 = vrot.lane.b32.xlu0 %v238, 64
    %v242 = vpop.permute.xlu0 %241
    %v244 = vmul.f32 %v238, %v242
    %246 = vrot.lane.b32.xlu0 %v244, 32
    %v247 = vpop.permute.xlu0 %246
    %v249 = vadd.f32 %v239, %v247
    %v250 = vtanh.pop %v249
    %252 = vrot.lane.b32.xlu0 %v250, 64
    %v253 = vpop.permute.xlu0 %252
    %v255 = vmul.f32 %v238, %v253
    %257 = vrot.lane.b32.xlu0 %v255, 32
    %v258 = vpop.permute.xlu0 %257
    %260 = vst.msk [vmem:[#allocation2 + $0x1] sm:$0x1] %vm151, %v258
    %v261 = vld [vmem:[#allocation3 + $0x2] sm:$0x1]
    %262 = vrot.lane.b32.xlu0 %v255, 48
    %v263 = vpop.permute.xlu0 %262
    %v265 = vsel %vm46, %v261, %v263
    %v267 = vsel %vm48, %v265, 0
    %269 = vmatprep.subr.mxu0 0.0
    %270 = vmatpush1.msra.mxu0 %v38
    %271 = vmatprep.subr.mxu0 0.0
    %272 = vmatpush1.msra.mxu0 %v39
    %273 = vmatprep.subr.mxu0 0.0
    %274 = vmatpush1.msra.mxu0 %v40
    %275 = vmatprep.subr.mxu0 0.0
    %276 = vmatpush1.msra.mxu0 %v41
    %277 = vmatprep.subr.mxu0 0.0
    %278 = vmatpush1.msra.mxu0 %v42
    %279 = vmatprep.subr.mxu0 0.0
    %280 = vmatpush1.msra.mxu0 %v43
    %281 = vmatprep.subr.mxu0 0.0
    %282 = vmatpush1.msra.mxu0 0.0
    %283 = vmatprep.subr.mxu0 0.0
    %284 = vmatpush1.msra.mxu0 0.0
    %285 = vmatprep.subr.mxu0 0.0
    %286 = vmatpush1.msra.mxu0 0.0
    %287 = vmatprep.subr.mxu0 0.0
    %288 = vmatpush1.msra.mxu0 0.0
    %289 = vmatprep.subr.mxu0 0.0
    %290 = vmatpush1.msra.mxu0 0.0
    %291 = vmatprep.subr.mxu0 0.0
    %292 = vmatpush1.msra.mxu0 0.0
    %293 = vmatprep.subr.mxu0 0.0
    %294 = vmatpush1.msra.mxu0 0.0
    %295 = vmatprep.subr.mxu0 0.0
    %296 = vmatpush1.msra.mxu0 0.0
    %297 = vmatprep.subr.mxu0 0.0
    %298 = vmatpush1.msra.mxu0 0.0
    %299 = vmatprep.subr.mxu0 0.0
    %300 = vmatpush1.msra.mxu0 0.0
    %301 = vmatprep.subr.mxu0 0.0
    %302 = vmatpush1.msra.mxu0 0.0
    %303 = vmatprep.subr.mxu0 0.0
    %304 = vmatpush1.msra.mxu0 0.0
    %305 = vmatprep.subr.mxu0 0.0
    %306 = vmatpush1.msra.mxu0 0.0
    %307 = vmatprep.subr.mxu0 0.0
    %308 = vmatpush1.msra.mxu0 0.0
    %309 = vmatprep.subr.mxu0 0.0
    %310 = vmatpush1.msra.mxu0 0.0
    %311 = vmatprep.subr.mxu0 0.0
    %312 = vmatpush1.msra.mxu0 0.0
    %313 = vmatprep.subr.mxu0 0.0
    %314 = vmatpush1.msra.mxu0 0.0
    %315 = vmatprep.subr.mxu0 0.0
    %316 = vmatpush1.msra.mxu0 0.0
    %317 = vmatprep.subr.mxu0 0.0
    %318 = vmatpush1.msra.mxu0 0.0
    %319 = vmatprep.subr.mxu0 0.0
    %320 = vmatpush1.msra.mxu0 0.0
    %321 = vmatprep.subr.mxu0 0.0
    %322 = vmatpush1.msra.mxu0 0.0
    %323 = vmatprep.subr.mxu0 0.0
    %324 = vmatpush1.msra.mxu0 0.0
    %325 = vmatprep.subr.mxu0 0.0
    %326 = vmatpush1.msra.mxu0 0.0
    %327 = vmatprep.subr.mxu0 0.0
    %328 = vmatpush1.msra.mxu0 0.0
    %329 = vmatprep.subr.mxu0 0.0
    %330 = vmatpush1.msra.mxu0 0.0
    %331 = vmatprep.subr.mxu0 0.0
    %332 = vmatpush1.msra.mxu0 0.0
    %333 = vmatprep.mubr.f32.mxu0 0.0
    %334 = vmatmul.mubr.f32.gmra.mrb[0].mxu0 %v267
    %v335 = vpop.f32.mrb[0].mxu0
    %v336 = vadd.f32 %v44, %v335
    %v337 = vpop.f32.mrb[0].mxu0
    %338 = vdwg.mxu0
    %v339 = vtanh.pop %v336
    %v340 = vxor.u32 %v336, 2147483648
    %v341 = vmul.f32 %v340, 1.442695
    %v342 = vpow.pop %v341
    %v343 = vadd.f32 %v342, 1.0
    %v344 = vrcp.pop %v343
    %v345 = vmul.f32 1.0, %v344
    %v346 = vsel %vm37, %v339, %v345
    %v347 = vmul.f32 %v346, %v249
    %349 = vrot.lane.b32.xlu0 %v346, 64
    %v350 = vpop.permute.xlu0 %349
    %v352 = vmul.f32 %v346, %v350
    %354 = vrot.lane.b32.xlu0 %v352, 32
    %v355 = vpop.permute.xlu0 %354
    %v357 = vadd.f32 %v347, %v355
    %v358 = vtanh.pop %v357
    %360 = vrot.lane.b32.xlu0 %v358, 64
    %v361 = vpop.permute.xlu0 %360
    %v363 = vmul.f32 %v346, %v361
    %365 = vrot.lane.b32.xlu0 %v363, 32
    %v366 = vpop.permute.xlu0 %365
    %368 = vst.msk [vmem:[#allocation2 + $0x2] sm:$0x1] %vm151, %v366
    %v369 = vld [vmem:[#allocation3 + $0x3] sm:$0x1]
    %370 = vrot.lane.b32.xlu0 %v363, 48
    %v371 = vpop.permute.xlu0 %370
    %v373 = vsel %vm46, %v369, %v371
    %v375 = vsel %vm48, %v373, 0
    %377 = vmatprep.subr.mxu0 0.0
    %378 = vmatpush1.msra.mxu0 %v38
    %379 = vmatprep.subr.mxu0 0.0
    %380 = vmatpush1.msra.mxu0 %v39
    %381 = vmatprep.subr.mxu0 0.0
    %382 = vmatpush1.msra.mxu0 %v40
    %383 = vmatprep.subr.mxu0 0.0
    %384 = vmatpush1.msra.mxu0 %v41
    %385 = vmatprep.subr.mxu0 0.0
    %386 = vmatpush1.msra.mxu0 %v42
    %387 = vmatprep.subr.mxu0 0.0
    %388 = vmatpush1.msra.mxu0 %v43
    %389 = vmatprep.subr.mxu0 0.0
    %390 = vmatpush1.msra.mxu0 0.0
    %391 = vmatprep.subr.mxu0 0.0
    %392 = vmatpush1.msra.mxu0 0.0
    %393 = vmatprep.subr.mxu0 0.0
    %394 = vmatpush1.msra.mxu0 0.0
    %395 = vmatprep.subr.mxu0 0.0
    %396 = vmatpush1.msra.mxu0 0.0
    %397 = vmatprep.subr.mxu0 0.0
    %398 = vmatpush1.msra.mxu0 0.0
    %399 = vmatprep.subr.mxu0 0.0
    %400 = vmatpush1.msra.mxu0 0.0
    %401 = vmatprep.subr.mxu0 0.0
    %402 = vmatpush1.msra.mxu0 0.0
    %403 = vmatprep.subr.mxu0 0.0
    %404 = vmatpush1.msra.mxu0 0.0
    %405 = vmatprep.subr.mxu0 0.0
    %406 = vmatpush1.msra.mxu0 0.0
    %407 = vmatprep.subr.mxu0 0.0
    %408 = vmatpush1.msra.mxu0 0.0
    %409 = vmatprep.subr.mxu0 0.0
    %410 = vmatpush1.msra.mxu0 0.0
    %411 = vmatprep.subr.mxu0 0.0
    %412 = vmatpush1.msra.mxu0 0.0
    %413 = vmatprep.subr.mxu0 0.0
    %414 = vmatpush1.msra.mxu0 0.0
    %415 = vmatprep.subr.mxu0 0.0
    %416 = vmatpush1.msra.mxu0 0.0
    %417 = vmatprep.subr.mxu0 0.0
    %418 = vmatpush1.msra.mxu0 0.0
    %419 = vmatprep.subr.mxu0 0.0
    %420 = vmatpush1.msra.mxu0 0.0
    %421 = vmatprep.subr.mxu0 0.0
    %422 = vmatpush1.msra.mxu0 0.0
    %423 = vmatprep.subr.mxu0 0.0
    %424 = vmatpush1.msra.mxu0 0.0
    %425 = vmatprep.subr.mxu0 0.0
    %426 = vmatpush1.msra.mxu0 0.0
    %427 = vmatprep.subr.mxu0 0.0
    %428 = vmatpush1.msra.mxu0 0.0
    %429 = vmatprep.subr.mxu0 0.0
    %430 = vmatpush1.msra.mxu0 0.0
    %431 = vmatprep.subr.mxu0 0.0
    %432 = vmatpush1.msra.mxu0 0.0
    %433 = vmatprep.subr.mxu0 0.0
    %434 = vmatpush1.msra.mxu0 0.0
    %435 = vmatprep.subr.mxu0 0.0
    %436 = vmatpush1.msra.mxu0 0.0
    %437 = vmatprep.subr.mxu0 0.0
    %438 = vmatpush1.msra.mxu0 0.0
    %439 = vmatprep.subr.mxu0 0.0
    %440 = vmatpush1.msra.mxu0 0.0
    %441 = vmatprep.mubr.f32.mxu0 0.0
    %442 = vmatmul.mubr.f32.gmra.mrb[0].mxu0 %v375
    %v443 = vpop.f32.mrb[0].mxu0
    %v444 = vadd.f32 %v44, %v443
    %v445 = vpop.f32.mrb[0].mxu0
    %446 = vdwg.mxu0
    %v447 = vtanh.pop %v444
    %v448 = vxor.u32 %v444, 2147483648
    %v449 = vmul.f32 %v448, 1.442695
    %v450 = vpow.pop %v449
    %v451 = vadd.f32 %v450, 1.0
    %v452 = vrcp.pop %v451
    %v453 = vmul.f32 1.0, %v452
    %v454 = vsel %vm37, %v447, %v453
    %v455 = vmul.f32 %v454, %v357
    %457 = vrot.lane.b32.xlu0 %v454, 64
    %v458 = vpop.permute.xlu0 %457
    %v460 = vmul.f32 %v454, %v458
    %462 = vrot.lane.b32.xlu0 %v460, 32
    %v463 = vpop.permute.xlu0 %462
    %v465 = vadd.f32 %v455, %v463
    %v466 = vtanh.pop %v465
    %468 = vrot.lane.b32.xlu0 %v466, 64
    %v469 = vpop.permute.xlu0 %468
    %v471 = vmul.f32 %v454, %v469
    %473 = vrot.lane.b32.xlu0 %v471, 32
    %v474 = vpop.permute.xlu0 %473
    %476 = vst.msk [vmem:[#allocation2 + $0x3] sm:$0x1] %vm151, %v474
    %v477 = vld [vmem:[#allocation3 + $0x4] sm:$0x1]
    %478 = vrot.lane.b32.xlu0 %v471, 48
    %v479 = vpop.permute.xlu0 %478
    %v481 = vsel %vm46, %v477, %v479
    %v483 = vsel %vm48, %v481, 0
    %485 = vmatprep.subr.mxu0 0.0
    %486 = vmatpush1.msra.mxu0 %v38
    %487 = vmatprep.subr.mxu0 0.0
    %488 = vmatpush1.msra.mxu0 %v39
    %489 = vmatprep.subr.mxu0 0.0
    %490 = vmatpush1.msra.mxu0 %v40
    %491 = vmatprep.subr.mxu0 0.0
    %492 = vmatpush1.msra.mxu0 %v41
    %493 = vmatprep.subr.mxu0 0.0
    %494 = vmatpush1.msra.mxu0 %v42
    %495 = vmatprep.subr.mxu0 0.0
    %496 = vmatpush1.msra.mxu0 %v43
    %497 = vmatprep.subr.mxu0 0.0
    %498 = vmatpush1.msra.mxu0 0.0
    %499 = vmatprep.subr.mxu0 0.0
    %500 = vmatpush1.msra.mxu0 0.0
    %501 = vmatprep.subr.mxu0 0.0
    %502 = vmatpush1.msra.mxu0 0.0
    %503 = vmatprep.subr.mxu0 0.0
    %504 = vmatpush1.msra.mxu0 0.0
    %505 = vmatprep.subr.mxu0 0.0
    %506 = vmatpush1.msra.mxu0 0.0
    %507 = vmatprep.subr.mxu0 0.0
    %508 = vmatpush1.msra.mxu0 0.0
    %509 = vmatprep.subr.mxu0 0.0
    %510 = vmatpush1.msra.mxu0 0.0
    %511 = vmatprep.subr.mxu0 0.0
    %512 = vmatpush1.msra.mxu0 0.0
    %513 = vmatprep.subr.mxu0 0.0
    %514 = vmatpush1.msra.mxu0 0.0
    %515 = vmatprep.subr.mxu0 0.0
    %516 = vmatpush1.msra.mxu0 0.0
    %517 = vmatprep.subr.mxu0 0.0
    %518 = vmatpush1.msra.mxu0 0.0
    %519 = vmatprep.subr.mxu0 0.0
    %520 = vmatpush1.msra.mxu0 0.0
    %521 = vmatprep.subr.mxu0 0.0
    %522 = vmatpush1.msra.mxu0 0.0
    %523 = vmatprep.subr.mxu0 0.0
    %524 = vmatpush1.msra.mxu0 0.0
    %525 = vmatprep.subr.mxu0 0.0
    %526 = vmatpush1.msra.mxu0 0.0
    %527 = vmatprep.subr.mxu0 0.0
    %528 = vmatpush1.msra.mxu0 0.0
    %529 = vmatprep.subr.mxu0 0.0
    %530 = vmatpush1.msra.mxu0 0.0
    %531 = vmatprep.subr.mxu0 0.0
    %532 = vmatpush1.msra.mxu0 0.0
    %533 = vmatprep.subr.mxu0 0.0
    %534 = vmatpush1.msra.mxu0 0.0
    %535 = vmatprep.subr.mxu0 0.0
    %536 = vmatpush1.msra.mxu0 0.0
    %537 = vmatprep.subr.mxu0 0.0
    %538 = vmatpush1.msra.mxu0 0.0
    %539 = vmatprep.subr.mxu0 0.0
    %540 = vmatpush1.msra.mxu0 0.0
    %541 = vmatprep.subr.mxu0 0.0
    %542 = vmatpush1.msra.mxu0 0.0
    %543 = vmatprep.subr.mxu0 0.0
    %544 = vmatpush1.msra.mxu0 0.0
    %545 = vmatprep.subr.mxu0 0.0
    %546 = vmatpush1.msra.mxu0 0.0
    %547 = vmatprep.subr.mxu0 0.0
    %548 = vmatpush1.msra.mxu0 0.0
    %549 = vmatprep.mubr.f32.mxu0 0.0
    %550 = vmatmul.mubr.f32.gmra.mrb[0].mxu0 %v483
    %v551 = vpop.f32.mrb[0].mxu0
    %v552 = vadd.f32 %v44, %v551
    %v553 = vpop.f32.mrb[0].mxu0
    %554 = vdwg.mxu0
    %v555 = vtanh.pop %v552
    %v556 = vxor.u32 %v552, 2147483648
    %v557 = vmul.f32 %v556, 1.442695
    %v558 = vpow.pop %v557
    %v559 = vadd.f32 %v558, 1.0
    %v560 = vrcp.pop %v559
    %v561 = vmul.f32 1.0, %v560
    %v562 = vsel %vm37, %v555, %v561
    %v563 = vmul.f32 %v562, %v465
    %565 = vrot.lane.b32.xlu0 %v562, 64
    %v566 = vpop.permute.xlu0 %565
    %v568 = vmul.f32 %v562, %v566
    %570 = vrot.lane.b32.xlu0 %v568, 32
    %v571 = vpop.permute.xlu0 %570
    %v573 = vadd.f32 %v563, %v571
    %v574 = vtanh.pop %v573
    %576 = vrot.lane.b32.xlu0 %v574, 64
    %v577 = vpop.permute.xlu0 %576
    %v579 = vmul.f32 %v562, %v577
    %581 = vrot.lane.b32.xlu0 %v579, 32
    %v582 = vpop.permute.xlu0 %581
    %584 = vst.msk [vmem:[#allocation2 + $0x4] sm:$0x1] %vm151, %v582
    %v585 = vld [vmem:[#allocation3 + $0x5] sm:$0x1]
    %586 = vrot.lane.b32.xlu0 %v579, 48
    %v587 = vpop.permute.xlu0 %586
    %v589 = vsel %vm46, %v585, %v587
    %v591 = vsel %vm48, %v589, 0
    %593 = vmatprep.subr.mxu0 0.0
    %594 = vmatpush1.msra.mxu0 %v38
    %595 = vmatprep.subr.mxu0 0.0
    %596 = vmatpush1.msra.mxu0 %v39
    %597 = vmatprep.subr.mxu0 0.0
    %598 = vmatpush1.msra.mxu0 %v40
    %599 = vmatprep.subr.mxu0 0.0
    %600 = vmatpush1.msra.mxu0 %v41
    %601 = vmatprep.subr.mxu0 0.0
    %602 = vmatpush1.msra.mxu0 %v42
    %603 = vmatprep.subr.mxu0 0.0
    %604 = vmatpush1.msra.mxu0 %v43
    %605 = vmatprep.subr.mxu0 0.0
    %606 = vmatpush1.msra.mxu0 0.0
    %607 = vmatprep.subr.mxu0 0.0
    %608 = vmatpush1.msra.mxu0 0.0
    %609 = vmatprep.subr.mxu0 0.0
    %610 = vmatpush1.msra.mxu0 0.0
    %611 = vmatprep.subr.mxu0 0.0
    %612 = vmatpush1.msra.mxu0 0.0
    %613 = vmatprep.subr.mxu0 0.0
    %614 = vmatpush1.msra.mxu0 0.0
    %615 = vmatprep.subr.mxu0 0.0
    %616 = vmatpush1.msra.mxu0 0.0
    %617 = vmatprep.subr.mxu0 0.0
    %618 = vmatpush1.msra.mxu0 0.0
    %619 = vmatprep.subr.mxu0 0.0
    %620 = vmatpush1.msra.mxu0 0.0
    %621 = vmatprep.subr.mxu0 0.0
    %622 = vmatpush1.msra.mxu0 0.0
    %623 = vmatprep.subr.mxu0 0.0
    %624 = vmatpush1.msra.mxu0 0.0
    %625 = vmatprep.subr.mxu0 0.0
    %626 = vmatpush1.msra.mxu0 0.0
    %627 = vmatprep.subr.mxu0 0.0
    %628 = vmatpush1.msra.mxu0 0.0
    %629 = vmatprep.subr.mxu0 0.0
    %630 = vmatpush1.msra.mxu0 0.0
    %631 = vmatprep.subr.mxu0 0.0
    %632 = vmatpush1.msra.mxu0 0.0
    %633 = vmatprep.subr.mxu0 0.0
    %634 = vmatpush1.msra.mxu0 0.0
    %635 = vmatprep.subr.mxu0 0.0
    %636 = vmatpush1.msra.mxu0 0.0
    %637 = vmatprep.subr.mxu0 0.0
    %638 = vmatpush1.msra.mxu0 0.0
    %639 = vmatprep.subr.mxu0 0.0
    %640 = vmatpush1.msra.mxu0 0.0
    %641 = vmatprep.subr.mxu0 0.0
    %642 = vmatpush1.msra.mxu0 0.0
    %643 = vmatprep.subr.mxu0 0.0
    %644 = vmatpush1.msra.mxu0 0.0
    %645 = vmatprep.subr.mxu0 0.0
    %646 = vmatpush1.msra.mxu0 0.0
    %647 = vmatprep.subr.mxu0 0.0
    %648 = vmatpush1.msra.mxu0 0.0
    %649 = vmatprep.subr.mxu0 0.0
    %650 = vmatpush1.msra.mxu0 0.0
    %651 = vmatprep.subr.mxu0 0.0
    %652 = vmatpush1.msra.mxu0 0.0
    %653 = vmatprep.subr.mxu0 0.0
    %654 = vmatpush1.msra.mxu0 0.0
    %655 = vmatprep.subr.mxu0 0.0
    %656 = vmatpush1.msra.mxu0 0.0
    %657 = vmatprep.mubr.f32.mxu0 0.0
    %658 = vmatmul.mubr.f32.gmra.mrb[0].mxu0 %v591
    %v659 = vpop.f32.mrb[0].mxu0
    %v660 = vadd.f32 %v44, %v659
    %v661 = vpop.f32.mrb[0].mxu0
    %662 = vdwg.mxu0
    %v663 = vtanh.pop %v660
    %v664 = vxor.u32 %v660, 2147483648
    %v665 = vmul.f32 %v664, 1.442695
    %v666 = vpow.pop %v665
    %v667 = vadd.f32 %v666, 1.0
    %v668 = vrcp.pop %v667
    %v669 = vmul.f32 1.0, %v668
    %v670 = vsel %vm37, %v663, %v669
    %v671 = vmul.f32 %v670, %v573
    %673 = vrot.lane.b32.xlu0 %v670, 64
    %v674 = vpop.permute.xlu0 %673
    %v676 = vmul.f32 %v670, %v674
    %678 = vrot.lane.b32.xlu0 %v676, 32
    %v679 = vpop.permute.xlu0 %678
    %v681 = vadd.f32 %v671, %v679
    %v682 = vtanh.pop %v681
    %684 = vrot.lane.b32.xlu0 %v682, 64
    %v685 = vpop.permute.xlu0 %684
    %v687 = vmul.f32 %v670, %v685
    %689 = vrot.lane.b32.xlu0 %v687, 32
    %v690 = vpop.permute.xlu0 %689
    %692 = vst.msk [vmem:[#allocation2 + $0x5] sm:$0x1] %vm151, %v690
    %v693 = vld [vmem:[#allocation3 + $0x6] sm:$0x1]
    %694 = vrot.lane.b32.xlu0 %v687, 48
    %v695 = vpop.permute.xlu0 %694
    %v697 = vsel %vm46, %v693, %v695
    %v699 = vsel %vm48, %v697, 0
    %701 = vmatprep.subr.mxu0 0.0
    %702 = vmatpush1.msra.mxu0 %v38
    %703 = vmatprep.subr.mxu0 0.0
    %704 = vmatpush1.msra.mxu0 %v39
    %705 = vmatprep.subr.mxu0 0.0
    %706 = vmatpush1.msra.mxu0 %v40
    %707 = vmatprep.subr.mxu0 0.0
    %708 = vmatpush1.msra.mxu0 %v41
    %709 = vmatprep.subr.mxu0 0.0
    %710 = vmatpush1.msra.mxu0 %v42
    %711 = vmatprep.subr.mxu0 0.0
    %712 = vmatpush1.msra.mxu0 %v43
    %713 = vmatprep.subr.mxu0 0.0
    %714 = vmatpush1.msra.mxu0 0.0
    %715 = vmatprep.subr.mxu0 0.0
    %716 = vmatpush1.msra.mxu0 0.0
    %717 = vmatprep.subr.mxu0 0.0
    %718 = vmatpush1.msra.mxu0 0.0
    %719 = vmatprep.subr.mxu0 0.0
    %720 = vmatpush1.msra.mxu0 0.0
    %721 = vmatprep.subr.mxu0 0.0
    %722 = vmatpush1.msra.mxu0 0.0
    %723 = vmatprep.subr.mxu0 0.0
    %724 = vmatpush1.msra.mxu0 0.0
    %725 = vmatprep.subr.mxu0 0.0
    %726 = vmatpush1.msra.mxu0 0.0
    %727 = vmatprep.subr.mxu0 0.0
    %728 = vmatpush1.msra.mxu0 0.0
    %729 = vmatprep.subr.mxu0 0.0
    %730 = vmatpush1.msra.mxu0 0.0
    %731 = vmatprep.subr.mxu0 0.0
    %732 = vmatpush1.msra.mxu0 0.0
    %733 = vmatprep.subr.mxu0 0.0
    %734 = vmatpush1.msra.mxu0 0.0
    %735 = vmatprep.subr.mxu0 0.0
    %736 = vmatpush1.msra.mxu0 0.0
    %737 = vmatprep.subr.mxu0 0.0
    %738 = vmatpush1.msra.mxu0 0.0
    %739 = vmatprep.subr.mxu0 0.0
    %740 = vmatpush1.msra.mxu0 0.0
    %741 = vmatprep.subr.mxu0 0.0
    %742 = vmatpush1.msra.mxu0 0.0
    %743 = vmatprep.subr.mxu0 0.0
    %744 = vmatpush1.msra.mxu0 0.0
    %745 = vmatprep.subr.mxu0 0.0
    %746 = vmatpush1.msra.mxu0 0.0
    %747 = vmatprep.subr.mxu0 0.0
    %748 = vmatpush1.msra.mxu0 0.0
    %749 = vmatprep.subr.mxu0 0.0
    %750 = vmatpush1.msra.mxu0 0.0
    %751 = vmatprep.subr.mxu0 0.0
    %752 = vmatpush1.msra.mxu0 0.0
    %753 = vmatprep.subr.mxu0 0.0
    %754 = vmatpush1.msra.mxu0 0.0
    %755 = vmatprep.subr.mxu0 0.0
    %756 = vmatpush1.msra.mxu0 0.0
    %757 = vmatprep.subr.mxu0 0.0
    %758 = vmatpush1.msra.mxu0 0.0
    %759 = vmatprep.subr.mxu0 0.0
    %760 = vmatpush1.msra.mxu0 0.0
    %761 = vmatprep.subr.mxu0 0.0
    %762 = vmatpush1.msra.mxu0 0.0
    %763 = vmatprep.subr.mxu0 0.0
    %764 = vmatpush1.msra.mxu0 0.0
    %765 = vmatprep.mubr.f32.mxu0 0.0
    %766 = vmatmul.mubr.f32.gmra.mrb[0].mxu0 %v699
    %v767 = vpop.f32.mrb[0].mxu0
    %v768 = vadd.f32 %v44, %v767
    %v769 = vpop.f32.mrb[0].mxu0
    %770 = vdwg.mxu0
    %v771 = vtanh.pop %v768
    %v772 = vxor.u32 %v768, 2147483648
    %v773 = vmul.f32 %v772, 1.442695
    %v774 = vpow.pop %v773
    %v775 = vadd.f32 %v774, 1.0
    %v776 = vrcp.pop %v775
    %v777 = vmul.f32 1.0, %v776
    %v778 = vsel %vm37, %v771, %v777
    %v779 = vmul.f32 %v778, %v681
    %781 = vrot.lane.b32.xlu0 %v778, 64
    %v782 = vpop.permute.xlu0 %781
    %v784 = vmul.f32 %v778, %v782
    %786 = vrot.lane.b32.xlu0 %v784, 32
    %v787 = vpop.permute.xlu0 %786
    %v789 = vadd.f32 %v779, %v787
    %v790 = vtanh.pop %v789
    %792 = vrot.lane.b32.xlu0 %v790, 64
    %v793 = vpop.permute.xlu0 %792
    %v795 = vmul.f32 %v778, %v793
    %797 = vrot.lane.b32.xlu0 %v795, 32
    %v798 = vpop.permute.xlu0 %797
    %800 = vst.msk [vmem:[#allocation2 + $0x6] sm:$0x1] %vm151, %v798
    %v801 = vld [vmem:[#allocation3 + $0x7] sm:$0x1]
    %802 = vrot.lane.b32.xlu0 %v795, 48
    %v803 = vpop.permute.xlu0 %802
    %v805 = vsel %vm46, %v801, %v803
    %v807 = vsel %vm48, %v805, 0
    %809 = vmatprep.subr.mxu0 0.0
    %810 = vmatpush1.msra.mxu0 %v38
    %811 = vmatprep.subr.mxu0 0.0
    %812 = vmatpush1.msra.mxu0 %v39
    %813 = vmatprep.subr.mxu0 0.0
    %814 = vmatpush1.msra.mxu0 %v40
    %815 = vmatprep.subr.mxu0 0.0
    %816 = vmatpush1.msra.mxu0 %v41
    %817 = vmatprep.subr.mxu0 0.0
    %818 = vmatpush1.msra.mxu0 %v42
    %819 = vmatprep.subr.mxu0 0.0
    %820 = vmatpush1.msra.mxu0 %v43
    %821 = vmatprep.subr.mxu0 0.0
    %822 = vmatpush1.msra.mxu0 0.0
    %823 = vmatprep.subr.mxu0 0.0
    %824 = vmatpush1.msra.mxu0 0.0
    %825 = vmatprep.subr.mxu0 0.0
    %826 = vmatpush1.msra.mxu0 0.0
    %827 = vmatprep.subr.mxu0 0.0
    %828 = vmatpush1.msra.mxu0 0.0
    %829 = vmatprep.subr.mxu0 0.0
    %830 = vmatpush1.msra.mxu0 0.0
    %831 = vmatprep.subr.mxu0 0.0
    %832 = vmatpush1.msra.mxu0 0.0
    %833 = vmatprep.subr.mxu0 0.0
    %834 = vmatpush1.msra.mxu0 0.0
    %835 = vmatprep.subr.mxu0 0.0
    %836 = vmatpush1.msra.mxu0 0.0
    %837 = vmatprep.subr.mxu0 0.0
    %838 = vmatpush1.msra.mxu0 0.0
    %839 = vmatprep.subr.mxu0 0.0
    %840 = vmatpush1.msra.mxu0 0.0
    %841 = vmatprep.subr.mxu0 0.0
    %842 = vmatpush1.msra.mxu0 0.0
    %843 = vmatprep.subr.mxu0 0.0
    %844 = vmatpush1.msra.mxu0 0.0
    %845 = vmatprep.subr.mxu0 0.0
    %846 = vmatpush1.msra.mxu0 0.0
    %847 = vmatprep.subr.mxu0 0.0
    %848 = vmatpush1.msra.mxu0 0.0
    %849 = vmatprep.subr.mxu0 0.0
    %850 = vmatpush1.msra.mxu0 0.0
    %851 = vmatprep.subr.mxu0 0.0
    %852 = vmatpush1.msra.mxu0 0.0
    %853 = vmatprep.subr.mxu0 0.0
    %854 = vmatpush1.msra.mxu0 0.0
    %855 = vmatprep.subr.mxu0 0.0
    %856 = vmatpush1.msra.mxu0 0.0
    %857 = vmatprep.subr.mxu0 0.0
    %858 = vmatpush1.msra.mxu0 0.0
    %859 = vmatprep.subr.mxu0 0.0
    %860 = vmatpush1.msra.mxu0 0.0
    %861 = vmatprep.subr.mxu0 0.0
    %862 = vmatpush1.msra.mxu0 0.0
    %863 = vmatprep.subr.mxu0 0.0
    %864 = vmatpush1.msra.mxu0 0.0
    %865 = vmatprep.subr.mxu0 0.0
    %866 = vmatpush1.msra.mxu0 0.0
    %867 = vmatprep.subr.mxu0 0.0
    %868 = vmatpush1.msra.mxu0 0.0
    %869 = vmatprep.subr.mxu0 0.0
    %870 = vmatpush1.msra.mxu0 0.0
    %871 = vmatprep.subr.mxu0 0.0
    %872 = vmatpush1.msra.mxu0 0.0
    %873 = vmatprep.mubr.f32.mxu0 0.0
    %874 = vmatmul.mubr.f32.gmra.mrb[0].mxu0 %v807
    %v875 = vpop.f32.mrb[0].mxu0
    %v876 = vadd.f32 %v44, %v875
    %v877 = vpop.f32.mrb[0].mxu0
    %878 = vdwg.mxu0
    %v879 = vtanh.pop %v876
    %v880 = vxor.u32 %v876, 2147483648
    %v881 = vmul.f32 %v880, 1.442695
    %v882 = vpow.pop %v881
    %v883 = vadd.f32 %v882, 1.0
    %v884 = vrcp.pop %v883
    %v885 = vmul.f32 1.0, %v884
    %v886 = vsel %vm37, %v879, %v885
    %v887 = vmul.f32 %v886, %v789
    %889 = vrot.lane.b32.xlu0 %v886, 64
    %v890 = vpop.permute.xlu0 %889
    %v892 = vmul.f32 %v886, %v890
    %894 = vrot.lane.b32.xlu0 %v892, 32
    %v895 = vpop.permute.xlu0 %894
    %v897 = vadd.f32 %v887, %v895
    %v898 = vtanh.pop %v897
    %900 = vrot.lane.b32.xlu0 %v898, 64
    %v901 = vpop.permute.xlu0 %900
    %v903 = vmul.f32 %v886, %v901
    %905 = vrot.lane.b32.xlu0 %v903, 32
    %v906 = vpop.permute.xlu0 %905
    %908 = vst.msk [vmem:[#allocation2 + $0x7] sm:$0x1] %vm151, %v906
    %v909 = vld [vmem:[#allocation2] sm:$0xff]
    %v910 = vld [vmem:[%s3] sm:$0xff]
    %v911 = vld [vmem:[%s3 + $0x8] sm:$0xff]
    %v912 = vld [vmem:[%s3 + $0x10] sm:$0xff]
    %v913 = vld [vmem:[%s3 + $0x18] sm:$0xff]
    %v914 = vld [vmem:[%s4] sm:$0x1]
    %v916 = vlaneseq
    %v917 = vshrl.u32 %v916, 7
    %v918 = vsub.s32 0, %v917
    %v919 = vrot.slane %v914, %v918
    %vm921 = vcmask 261120
    %v923 = vsel %vm921, %v909, 0
    %925 = vmatprep.subr.mxu0 0.0
    %926 = vmatpush1.msra.mxu0 %v910
    %927 = vmatprep.subr.mxu0 0.0
    %928 = vmatpush1.msra.mxu0 %v911
    %929 = vmatprep.subr.mxu0 0.0
    %930 = vmatpush1.msra.mxu0 %v912
    %931 = vmatprep.subr.mxu0 0.0
    %932 = vmatpush1.msra.mxu0 %v913
    %933 = vmatprep.subr.mxu0 0.0
    %934 = vmatpush1.msra.mxu0 0.0
    %935 = vmatprep.subr.mxu0 0.0
    %936 = vmatpush1.msra.mxu0 0.0
    %937 = vmatprep.subr.mxu0 0.0
    %938 = vmatpush1.msra.mxu0 0.0
    %939 = vmatprep.subr.mxu0 0.0
    %940 = vmatpush1.msra.mxu0 0.0
    %941 = vmatprep.subr.mxu0 0.0
    %942 = vmatpush1.msra.mxu0 0.0
    %943 = vmatprep.subr.mxu0 0.0
    %944 = vmatpush1.msra.mxu0 0.0
    %945 = vmatprep.subr.mxu0 0.0
    %946 = vmatpush1.msra.mxu0 0.0
    %947 = vmatprep.subr.mxu0 0.0
    %948 = vmatpush1.msra.mxu0 0.0
    %949 = vmatprep.subr.mxu0 0.0
    %950 = vmatpush1.msra.mxu0 0.0
    %951 = vmatprep.subr.mxu0 0.0
    %952 = vmatpush1.msra.mxu0 0.0
    %953 = vmatprep.subr.mxu0 0.0
    %954 = vmatpush1.msra.mxu0 0.0
    %955 = vmatprep.subr.mxu0 0.0
    %956 = vmatpush1.msra.mxu0 0.0
    %957 = vmatprep.subr.mxu0 0.0
    %958 = vmatpush1.msra.mxu0 0.0
    %959 = vmatprep.subr.mxu0 0.0
    %960 = vmatpush1.msra.mxu0 0.0
    %961 = vmatprep.subr.mxu0 0.0
    %962 = vmatpush1.msra.mxu0 0.0
    %963 = vmatprep.subr.mxu0 0.0
    %964 = vmatpush1.msra.mxu0 0.0
    %965 = vmatprep.subr.mxu0 0.0
    %966 = vmatpush1.msra.mxu0 0.0
    %967 = vmatprep.subr.mxu0 0.0
    %968 = vmatpush1.msra.mxu0 0.0
    %969 = vmatprep.subr.mxu0 0.0
    %970 = vmatpush1.msra.mxu0 0.0
    %971 = vmatprep.subr.mxu0 0.0
    %972 = vmatpush1.msra.mxu0 0.0
    %973 = vmatprep.subr.mxu0 0.0
    %974 = vmatpush1.msra.mxu0 0.0
    %975 = vmatprep.subr.mxu0 0.0
    %976 = vmatpush1.msra.mxu0 0.0
    %977 = vmatprep.subr.mxu0 0.0
    %978 = vmatpush1.msra.mxu0 0.0
    %979 = vmatprep.subr.mxu0 0.0
    %980 = vmatpush1.msra.mxu0 0.0
    %981 = vmatprep.subr.mxu0 0.0
    %982 = vmatpush1.msra.mxu0 0.0
    %983 = vmatprep.subr.mxu0 0.0
    %984 = vmatpush1.msra.mxu0 0.0
    %985 = vmatprep.subr.mxu0 0.0
    %986 = vmatpush1.msra.mxu0 0.0
    %987 = vmatprep.subr.mxu0 0.0
    %988 = vmatpush1.msra.mxu0 0.0
    %989 = vmatprep.mubr.f32.mxu0 0.0
    %990 = vmatmul.mubr.f32.gmra.mrb[0].mxu0 %v923
    %v991 = vpop.f32.mrb[0].mxu0
    %v992 = vadd.f32 %v919, %v991
    %v993 = vpop.f32.mrb[0].mxu0
    %994 = vdwg.mxu0
    %995 = vst.msk [vmem:[#allocation6] sm:$0xff] %vm46, %v992
    // Predicated region
    $region26: #{tpu_custom_call.1} parent=1 // pred_check
      _
    $region27: #{tpu_custom_call.1} parent=1 // pred_check_branch
      %997 = sbr.rel (0) target = $region29
    $region28: #{tpu_custom_call.1} parent=1 // pred_region
      %s999 = ssub.s32 128, 128
      %1000 = vsyncadd [#allocation5], %s999
      %s1002 = sshll.u32 [#allocation6], 4
      %s1003 = int_to_ptr.vmem [resolvable:$true] %s1002
      %1005 = dma.vmem_to_hbm [thread:$0]  %s1003, 128, %s5, [#allocation5]
    $region29: #{tpu_custom_call.1} parent=1 // pred_fallthru
      _
    // Predicated region
    $region30: #{tpu_custom_call.1} parent=1 // pred_check
      _
    $region31: #{tpu_custom_call.1} parent=1 // pred_check_branch
      %1007 = sbr.rel (0) target = $region33
    $region32: #{tpu_custom_call.1} parent=1 // pred_region
      %1008 = dma.done [#allocation5], 128
    $region33: #{tpu_custom_call.1} parent=1 // pred_fallthru
      _
    %1009 = vsyncpa [#allocation4], 1
    %1010 = vsyncpa [#allocation5], 1

</llo_original>
